<compile_context>
chip_gen: v7x
topology: tpu7x:2x2x1
jax: 0.10.0
libtpu: 0.0.40
codegen_flags: <defaults>
</compile_context>

<pallas_src>
import functools

import jax
import jax.numpy as jnp
from jax.experimental import pallas as pl
from jax.experimental.pallas import tpu as pltpu


def _round_up(v, m):
    return ((v + m - 1) // m) * m


def _conv1d_bank_kernel(x_ref, w_ref, b_ref, len_ref, o_ref):
    """One grid step = Bt batch elements.

    x_ref   : VMEM (Bt, L, D)      input block (no host-side zero pad)
    w_ref   : VMEM (4*D, C4p)      shift-packed conv weights (lane-padded)
    b_ref   : VMEM (1, C4p)        concatenated biases (f32, lane-padded)
    len_ref : VMEM (Bt, 1) int32   per-element valid lengths
    o_ref   : VMEM (Bt, C4p)       max-over-time output block (lane-dense)
    """
    Bt, L, D = x_ref.shape
    C4p = o_ref.shape[1]

    # im2col: lane-concatenate 4 time-shifted views of x so the four convs
    # (k = 1..4) become a single (Bt*L, 4D) x (4D, C4p) MXU matmul.  Each
    # shifted chunk is built directly (drop j leading time rows, append j zero
    # rows) -- the full (Bt, L+3, D) zero-padded copy of x from v2 is never
    # materialized.  (pltpu.roll along the time/sublane axis would keep the
    # shift as a pure XLU rotate, but the wrapped rows would then need a VPU
    # select to zero, so the slice + zero-tail form is kept.)
    # Note for v5e: with bf16 inputs the odd time-shifts operate on
    # sublane-packed data (16 rows/vreg) and may force unpack/repack; if that
    # shows up in a bundle dump, build the chunks in f32 and cast `lhs` to
    # bf16 right before the dot.
    x = x_ref[...]
    chunks = [x]
    for j in range(1, 4):
        chunks.append(jnp.concatenate(
            [x[:, j:, :], jnp.zeros((Bt, j, D), x.dtype)], axis=1))
    lhs = jnp.concatenate(chunks, axis=2).reshape(Bt * L, 4 * D)

    # Single MXU matmul with f32 accumulation; bias + ReLU epilogue in f32.
    acc = jnp.dot(lhs, w_ref[...], preferred_element_type=jnp.float32)
    y = jnp.maximum(acc + b_ref[...], 0.0).reshape(Bt, L, C4p)

    # mask3d2d: zero out time steps t >= mask_len[b]; the (Bt, L, 1) mask
    # broadcasts across the lane (channel) dimension inside the where.
    t = jax.lax.broadcasted_iota(jnp.int32, (Bt, L, 1), 1)
    valid = t < len_ref[...].reshape(Bt, 1, 1)
    y = jnp.where(valid, y, 0.0)

    # max_along_time (lengths=None) -> max over the time axis (sublane reduce).
    o_ref[...] = jnp.max(y, axis=1).astype(o_ref.dtype)


def conv1d_forward(x, mask_len, weights, biases, *, block_b=512,
                   compute_dtype=jnp.bfloat16,
                   vmem_budget_bytes=24 * 1024 * 1024):
    """Pallas forward pass.

    x        : (B, L, D) float32
    mask_len : (B,) int32
    weights  : dict k -> (C, D, k) float32  (PyTorch Conv1d weight layout)
    biases   : dict k -> (C,) float32
    returns  : (B, 4*C) float32
    """
    B, L, D = x.shape
    C = weights[1].shape[0]
    C4 = 4 * C
    # Lane-dense (unmasked-store) output width.  If production C ever grows
    # enough that the matmul N dimension must be split, pad to a multiple of
    # 256 instead so v6e/v7x 256x256 MXU tiles stay full; at C4p=128 / K=128
    # the v5e 128x128 MXUs are already perfectly filled and the kernel is not
    # MXU-bound, so nothing to change here.
    C4p = _round_up(C4, 128)
    K4 = 4 * D

    # ---- batch tile Bt, derived from a VMEM byte budget --------------------
    # Per-step live VMEM bytes as a function of Bt:
    #   2*L*D*sz        x block (double-buffered by the pipeline)
    #   L*4D*sz         im2col lhs
    #   2*L*C4p*4       f32 matmul acc + masked y
    #   2*C4p*4 + 8     f32 output block (double-buffered) + lengths
    # Grid-invariant weight/bias blocks are counted double-buffered; single-
    # buffering them (pipeline_mode=pl.Buffered(1)) would halve that term --
    # trivial here (~64 KiB at C4p=128) but worth enabling if C is large.
    sz = jnp.dtype(compute_dtype).itemsize
    per_b = 2 * L * D * sz + L * K4 * sz + 2 * L * C4p * 4 + 2 * C4p * 4 + 8
    fixed = 2 * K4 * C4p * sz + 2 * C4p * 4
    bt_budget = max(8, ((vmem_budget_bytes - fixed) // per_b) // 8 * 8)
    block_b_eff = max(8, (block_b // 8) * 8)

    if B <= 8:
        Bt = B                      # tiny batch: one step, blocks = full dims
    else:
        # Keep >= 2 grid steps so ("parallel",) shards across v7x's 2 TCs.
        bt_two_steps = max(8, _round_up((B + 1) // 2, 8))
        Bt = max(8, min(block_b_eff, bt_budget, bt_two_steps))
    Bp = _round_up(B, Bt)
    if Bp != B:
        x = jnp.concatenate([x, jnp.zeros((Bp - B, L, D), x.dtype)], axis=0)
        mask_len = jnp.concatenate(
            [mask_len, jnp.zeros((Bp - B,), mask_len.dtype)])

    # Scoped-VMEM limit: at least 32 MiB (raises v5e's 16 MiB default, matches
    # v6e/v7x defaults), with headroom over the estimate, capped well below
    # v7x's 64 MiB physical VMEM.
    est_vmem = fixed + per_b * Bt
    vmem_limit = int(min(max(32 * 1024 * 1024, est_vmem * 5 // 4 + (2 << 20)),
                         48 * 1024 * 1024))

    # ---- parameter packing --------------------------------------------------
    # Pack weights per temporal shift j into one (4*D, C4p) matrix: the conv of
    # kernel size k contributes W_k[:, :, j].T to its channel block iff j < k.
    # Channel-block order matches torch.cat([x1, x2, x3, x4], dim=1); columns
    # [C4:C4p) are zero (padding channels -> conv output 0, sliced off below).
    w_big = jnp.zeros((4, D, C4p), jnp.float32)
    for j in range(4):
        for idx, k in enumerate((1, 2, 3, 4)):
            if j < k:
                w_big = w_big.at[j, :, idx * C:(idx + 1) * C].set(
                    weights[k][:, :, j].T)
    w_big = w_big.reshape(K4, C4p).astype(compute_dtype)
    bias_all = jnp.zeros((1, C4p), jnp.float32)
    bias_all = bias_all.at[0, :C4].set(
        jnp.concatenate([biases[k] for k in (1, 2, 3, 4)]))

    # NOTE: casting x (not just the weights) to bf16 introduces input
    # quantization error; acceptable under ~5e-2 tolerance, pass
    # compute_dtype=jnp.float32 for a bit-faithful path.
    x_in = x.astype(compute_dtype)
    lens = mask_len.astype(jnp.int32).reshape(Bp, 1)

    grid_spec = pltpu.PrefetchScalarGridSpec(
        num_scalar_prefetch=0,
        grid=(Bp // Bt,),
        in_specs=[
            pl.BlockSpec((Bt, L, D), lambda g: (g, 0, 0)),
            # Weight / bias blocks are grid-invariant (constant index maps) so
            # they are fetched once; they still get default double buffers
            # (~64 KiB total at C4p=128 -- left as-is, see VMEM formula above).
            pl.BlockSpec((K4, C4p), lambda g: (0, 0)),
            pl.BlockSpec((1, C4p), lambda g: (0, 0)),
            pl.BlockSpec((Bt, 1), lambda g: (g, 0)),
        ],
        out_specs=pl.BlockSpec((Bt, C4p), lambda g: (g, 0)),
    )

    out = pl.pallas_call(
        _conv1d_bank_kernel,
        out_shape=jax.ShapeDtypeStruct((Bp, C4p), jnp.float32),
        grid_spec=grid_spec,
        # Batch blocks are independent -> parallel (v7x: sharded over 2 TCs
        # whenever the grid has >= 2 steps, which the Bt cap above guarantees
        # for non-tiny batches).
        compiler_params=pltpu.CompilerParams(
            dimension_semantics=("parallel",),
            vmem_limit_bytes=vmem_limit),
    )(x_in, w_big, bias_all, lens)

    return out[:B, :C4]


def conv1d_reference(x, mask_len, weights, biases):
    """Pure-JAX replica of the PyTorch forward, used as correctness reference."""
    B, L, D = x.shape
    x_pad = jnp.concatenate([x, jnp.zeros((B, 3, D), x.dtype)], axis=1)
    xc = jnp.transpose(x_pad, (0, 2, 1))                    # (B, D, L+3)
    outs = []
    for k in (1, 2, 3, 4):
        y = jax.lax.conv_general_dilated(
            xc, weights[k], window_strides=(1,), padding="VALID",
            dimension_numbers=("NCH", "OIH", "NCH"))
        y = jnp.maximum(y + biases[k][None, :, None], 0.0)
        outs.append(y[:, :, :L])
    out = jnp.concatenate(outs, axis=1)                     # (B, 4C, L)
    out = jnp.transpose(out, (0, 2, 1))                     # (B, L, 4C)
    t = jnp.arange(L)[None, :, None]
    out = jnp.where(t < mask_len[:, None, None], out, 0.0)
    return jnp.max(out, axis=1)


if __name__ == "__main__":
    # Small shapes implied by the forward: x (B, L, n_dim), mask_len (B,)
    B, L, n_dim, out_dim_arg = 2, 8, 32, 32
    C = out_dim_arg // 4                                    # per-conv out channels

    key = jax.random.PRNGKey(0)
    keys = jax.random.split(key, 11)
    x = jax.random.normal(keys[0], (B, L, n_dim), jnp.float32)
    mask_len = jnp.array([L, 5], jnp.int32)

    # Deterministic synthetic parameters (PyTorch Conv1d weight layout (C, D, k)).
    weights, biases = {}, {}
    for i, k in enumerate((1, 2, 3, 4)):
        weights[k] = 0.1 * jax.random.normal(keys[1 + i], (C, n_dim, k), jnp.float32)
        biases[k] = 0.05 * jax.random.normal(keys[5 + i], (C,), jnp.float32)

    ref = conv1d_reference(x, mask_len, weights, biases)

    # Default path: bf16 MXU inputs, f32 accumulate + f32 epilogue.
    fwd = jax.jit(functools.partial(conv1d_forward, weights=weights, biases=biases))
    out = fwd(x, mask_len)
    jax.block_until_ready(out)
    assert out.shape == (B, 4 * C), out.shape
    assert jnp.allclose(out, ref, atol=5e-2, rtol=5e-2), (
        float(jnp.max(jnp.abs(out - ref))))

    # f32 path (bit-faithful to the module, tight tolerance).
    fwd_f32 = jax.jit(functools.partial(
        conv1d_forward, weights=weights, biases=biases,
        compute_dtype=jnp.float32))
    out_f32 = fwd_f32(x, mask_len)
    jax.block_until_ready(out_f32)
    assert jnp.allclose(out_f32, ref, atol=1e-5, rtol=1e-5), (
        float(jnp.max(jnp.abs(out_f32 - ref))))

    # Multi-block path: B > Bt exercises batch tiling + batch padding (Bt=8).
    B2 = 10
    x2 = jax.random.normal(keys[9], (B2, L, n_dim), jnp.float32)
    mask2 = jnp.minimum(jnp.arange(1, B2 + 1, dtype=jnp.int32), L)
    fwd2 = jax.jit(functools.partial(
        conv1d_forward, weights=weights, biases=biases, block_b=8,
        compute_dtype=jnp.float32))
    out2 = fwd2(x2, mask2)
    jax.block_until_ready(out2)
    ref2 = conv1d_reference(x2, mask2, weights, biases)
    assert out2.shape == (B2, 4 * C), out2.shape
    assert jnp.allclose(out2, ref2, atol=1e-5, rtol=1e-5), (
        float(jnp.max(jnp.abs(out2 - ref2))))

    # Derived-tile path: B large enough that Bt is auto-derived and the grid
    # is forced to >= 2 parallel steps (v7x two-TC sharding path).
    B3 = 48
    x3 = jax.random.normal(keys[10], (B3, L, n_dim), jnp.float32)
    mask3 = jnp.minimum(1 + (jnp.arange(B3, dtype=jnp.int32) % L), L)
    fwd3 = jax.jit(functools.partial(conv1d_forward, weights=weights, biases=biases))
    out3 = fwd3(x3, mask3)
    jax.block_until_ready(out3)
    ref3 = conv1d_reference(x3, mask3, weights, biases)
    assert out3.shape == (B3, 4 * C), out3.shape
    assert jnp.allclose(out3, ref3, atol=5e-2, rtol=5e-2), (
        float(jnp.max(jnp.abs(out3 - ref3))))

    print("KERNEL_OK")
</pallas_src>

<mosaic_0001>
module attributes {stable_mosaic.version = 11 : i64} {
  func.func @_conv1d_bank_kernel(%arg0: i32, %arg1: memref<2x8x32xbf16, #tpu.memory_space<vmem>>, %arg2: memref<128x128xbf16, #tpu.memory_space<vmem>>, %arg3: memref<1x128xf32, #tpu.memory_space<vmem>>, %arg4: memref<2x1xi32, #tpu.memory_space<vmem>>, %arg5: memref<2x128xf32, #tpu.memory_space<vmem>>) attributes {dimension_semantics = [#tpu.dimension_semantics<parallel>], iteration_bounds = array<i64: 1>, scalar_prefetch = 0 : i64, scratch_operands = 0 : i64, tpu.core_type = #tpu.core_type<tc>, window_params = [{transform_indices = @transform_0, window_bounds = array<i64: 2, 8, 32>}, {pipeline_mode = #tpu.pipeline_mode<synchronous>, transform_indices = @transform_1, window_bounds = array<i64: 128, 128>}, {pipeline_mode = #tpu.pipeline_mode<synchronous>, transform_indices = @transform_2, window_bounds = array<i64: 1, 128>}, {transform_indices = @transform_3, window_bounds = array<i64: 2, 1>}, {transform_indices = @transform_4, window_bounds = array<i64: 2, 128>}]} {
    %c0 = arith.constant 0 : index
    %c0_0 = arith.constant 0 : index
    %c0_1 = arith.constant 0 : index
    %0 = vector.load %arg1[%c0, %c0_0, %c0_1] : memref<2x8x32xbf16, #tpu.memory_space<vmem>>, vector<2x8x32xbf16>
    %1 = vector.extract_strided_slice %0 {offsets = [0, 1, 0], sizes = [2, 7, 32], strides = [1, 1, 1]} : vector<2x8x32xbf16> to vector<2x7x32xbf16>
    %cst = arith.constant 0.000000e+00 : bf16
    %2 = vector.broadcast %cst : bf16 to vector<2x1x32xbf16>
    %3 = tpu.concatenate %1, %2 in 1 : vector<2x7x32xbf16>, vector<2x1x32xbf16> -> vector<2x8x32xbf16>
    %4 = vector.extract_strided_slice %0 {offsets = [0, 2, 0], sizes = [2, 6, 32], strides = [1, 1, 1]} : vector<2x8x32xbf16> to vector<2x6x32xbf16>
    %cst_2 = arith.constant 0.000000e+00 : bf16
    %5 = vector.broadcast %cst_2 : bf16 to vector<2x2x32xbf16>
    %6 = tpu.concatenate %4, %5 in 1 : vector<2x6x32xbf16>, vector<2x2x32xbf16> -> vector<2x8x32xbf16>
    %7 = vector.extract_strided_slice %0 {offsets = [0, 3, 0], sizes = [2, 5, 32], strides = [1, 1, 1]} : vector<2x8x32xbf16> to vector<2x5x32xbf16>
    %cst_3 = arith.constant 0.000000e+00 : bf16
    %8 = vector.broadcast %cst_3 : bf16 to vector<2x3x32xbf16>
    %9 = tpu.concatenate %7, %8 in 1 : vector<2x5x32xbf16>, vector<2x3x32xbf16> -> vector<2x8x32xbf16>
    %10 = tpu.concatenate %0, %3, %6, %9 in 2 : vector<2x8x32xbf16>, vector<2x8x32xbf16>, vector<2x8x32xbf16>, vector<2x8x32xbf16> -> vector<2x8x128xbf16>
    %11 = vector.shape_cast %10 : vector<2x8x128xbf16> to vector<16x128xbf16>
    %c0_4 = arith.constant 0 : index
    %c0_5 = arith.constant 0 : index
    %12 = vector.load %arg2[%c0_4, %c0_5] : memref<128x128xbf16, #tpu.memory_space<vmem>>, vector<128x128xbf16>
    %cst_6 = arith.constant dense<0.000000e+00> : vector<16x128xf32>
    %13 = tpu.matmul %11, %12, %cst_6 {dimension_numbers = #tpu.dot_dimension_numbers<[1], [0], [0], [1], [0, 0, 1, 1], [], []>} : vector<16x128xbf16>, vector<128x128xbf16>, vector<16x128xf32> -> vector<16x128xf32>
    %c0_7 = arith.constant 0 : index
    %c0_8 = arith.constant 0 : index
    %14 = vector.load %arg3[%c0_7, %c0_8] : memref<1x128xf32, #tpu.memory_space<vmem>>, vector<1x128xf32>
    %15 = vector.broadcast %14 : vector<1x128xf32> to vector<16x128xf32>
    %16 = arith.addf %13, %15 : vector<16x128xf32>
    %cst_9 = arith.constant 0.000000e+00 : f32
    %17 = vector.broadcast %cst_9 : f32 to vector<16x128xf32>
    %18 = arith.maximumf %16, %17 : vector<16x128xf32>
    %19 = vector.shape_cast %18 : vector<16x128xf32> to vector<2x8x128xf32>
    %20 = tpu.iota {dimensions = array<i32: 1>} : vector<2x8x1xi32>
    %c0_10 = arith.constant 0 : index
    %c0_11 = arith.constant 0 : index
    %21 = vector.load %arg4[%c0_10, %c0_11] : memref<2x1xi32, #tpu.memory_space<vmem>>, vector<2x1xi32>
    %22 = vector.shape_cast %21 : vector<2x1xi32> to vector<2x1x1xi32>
    %23 = vector.broadcast %22 : vector<2x1x1xi32> to vector<2x8x1xi32>
    %24 = arith.cmpi slt, %20, %23 : vector<2x8x1xi32>
    %cst_12 = arith.constant 0.000000e+00 : f32
    %25 = vector.shape_cast %24 : vector<2x8x1xi1> to vector<2x8x1xi1>
    %26 = vector.broadcast %25 : vector<2x8x1xi1> to vector<2x8x128xi1>
    %27 = vector.broadcast %cst_12 : f32 to vector<2x8x128xf32>
    %28 = arith.select %26, %19, %27 : vector<2x8x128xi1>, vector<2x8x128xf32>
    %cst_13 = arith.constant dense<0xFF800000> : vector<2x128xf32>
    %29 = vector.multi_reduction <maximumf>, %28, %cst_13 [1] : vector<2x8x128xf32> to vector<2x128xf32>
    %c0_14 = arith.constant 0 : index
    %c0_15 = arith.constant 0 : index
    %30 = vector.load %arg5[%c0_14, %c0_15] : memref<2x128xf32, #tpu.memory_space<vmem>>, vector<2x128xf32>
    tpu.vector_store %arg5[%c0_14, %c0_15], %29 {strides = array<i32>} : memref<2x128xf32, #tpu.memory_space<vmem>>, vector<2x128xf32>,
    return
  }
  func.func @transform_0(%arg0: i32) -> (i32, i32, i32) {
    %c0_i32 = arith.constant 0 : i32
    %c0_i32_0 = arith.constant 0 : i32
    %c0_i32_1 = arith.constant 0 : i32
    return %arg0, %c0_i32, %c0_i32_0 : i32, i32, i32
  }
  func.func @transform_1(%arg0: i32) -> (i32, i32) {
    %c0_i32 = arith.constant 0 : i32
    %c0_i32_0 = arith.constant 0 : i32
    %c0_i32_1 = arith.constant 0 : i32
    return %c0_i32, %c0_i32_0 : i32, i32
  }
  func.func @transform_2(%arg0: i32) -> (i32, i32) {
    %c0_i32 = arith.constant 0 : i32
    %c0_i32_0 = arith.constant 0 : i32
    %c0_i32_1 = arith.constant 0 : i32
    return %c0_i32, %c0_i32_0 : i32, i32
  }
  func.func @transform_3(%arg0: i32) -> (i32, i32) {
    %c0_i32 = arith.constant 0 : i32
    %c0_i32_0 = arith.constant 0 : i32
    return %arg0, %c0_i32 : i32, i32
  }
  func.func @transform_4(%arg0: i32) -> (i32, i32) {
    %c0_i32 = arith.constant 0 : i32
    %c0_i32_0 = arith.constant 0 : i32
    return %arg0, %c0_i32 : i32, i32
  }
}

</mosaic_0001>

<llo_original>
// kernel: conv1d_forward.1
$region0: #{conv1d_forward.1}
  #allocation0 [shape = 'u32[]', space=smem, size = 0x4, offset = 0x4, fixed_abs, tag = 'smem constant byte address 0x4 - core index']
  #allocation1 [shape = 'u32[144,128]{1,0:T(1,128)}', space=vmem, size = 0x12000, scoped, tag = 'internal scratch']
  %s0 = inlined_call_operand.vmem [shape: bf16[2,8,32], index: 0, kind: input, shape index: {}]
  %s1 = inlined_call_operand.vmem [shape: bf16[128,128], index: 1, kind: input, shape index: {}]
  %s2 = inlined_call_operand.vmem [shape: f32[1,128], index: 2, kind: input, shape index: {}]
  %s3 = inlined_call_operand.vmem [shape: s32[2,1], index: 3, kind: input, shape index: {}]
  %s4 = inlined_call_operand.hbm [shape: f32[2,128], index: 4, kind: output, shape index: {}]
  %s5 = sld [smem:[#allocation0]]
  $region26: #{conv1d_forward.1} parent=0
    _
  %s7 = ssub.s32 1, %s5
  %s8 = scalar_select 0, %s7, %s5
  $region1: #{conv1d_forward.1} parent=0
    #allocation2 [shape = 'u8[1024]{0}', space=vmem, size = 0x400, scoped, tag = 'output window, operand 0, single buffered']
    #allocation3 [shape = 's32[1]{0}', space=sflag, size = 0x4, scoped, tag = 'scoped memory for conv1d_forward.1']
    %9 = vsyncpa [#allocation3], 0
    // Predicated region
    $region2: #{conv1d_forward.1} parent=1 // pred_check
      _
    $region3: #{conv1d_forward.1} parent=1 // pred_check_branch
      %11 = sbr.rel (0) target = $region5
    $region4: #{conv1d_forward.1} parent=1 // pred_region
      _
    $region5: #{conv1d_forward.1} parent=1 // pred_fallthru
      _
    // Predicated region
    $region6: #{conv1d_forward.1} parent=1 // pred_check
      _
    $region7: #{conv1d_forward.1} parent=1 // pred_check_branch
      %13 = sbr.rel (0) target = $region9
    $region8: #{conv1d_forward.1} parent=1 // pred_region
      _
    $region9: #{conv1d_forward.1} parent=1 // pred_fallthru
      _
    // Predicated region
    $region10: #{conv1d_forward.1} parent=1 // pred_check
      _
    $region11: #{conv1d_forward.1} parent=1 // pred_check_branch
      %15 = sbr.rel (0) target = $region13
    $region12: #{conv1d_forward.1} parent=1 // pred_region
      _
    $region13: #{conv1d_forward.1} parent=1 // pred_fallthru
      _
    // Predicated region
    $region14: #{conv1d_forward.1} parent=1 // pred_check
      _
    $region15: #{conv1d_forward.1} parent=1 // pred_check_branch
      %17 = sbr.rel (0) target = $region17
    $region16: #{conv1d_forward.1} parent=1 // pred_region
      _
    $region17: #{conv1d_forward.1} parent=1 // pred_fallthru
      _
    %v19 = vld [vmem:[%s0] sm:$0xf]
    %v20 = vld [vmem:[%s0 + $0x4] sm:$0xf]
    %v23 = vunpack.c.l.b16 %v19
    %v24 = vunpack.c.l.b16 %v20
    %v25 = vpack.c.b16 %v23, %v23
    %v26 = vpack.c.b16 %v24, %v24
    %v28 = vshrl.u32 %v25, 16
    %v30 = vshll.u32 %v25, 16
    %v32 = vrot.slane %v30, 1
    %v33 = vor.u32 %v28, %v32
    %v35 = vshrl.u32 %v26, 16
    %v37 = vshll.u32 %v26, 16
    %v39 = vrot.slane %v37, 1
    %v40 = vor.u32 %v35, %v39
    %vm43 = vcmask 1043456
    %vm44 = vsmask.f32 3328
    %vm45 = vmand %vm43, %vm44
    %v46 = vsel %vm45, %v33, 0
    %v47 = vsel %vm45, %v40, 0
    %v48 = vrot.slane %v25, 1
    %v49 = vrot.slane %v26, 1
    %vm50 = vcmask 1042432
    %v53 = vsel %vm50, %v48, 0
    %v55 = vsel %vm50, %v49, 0
    %v56 = vrot.slane %v28, 1
    %v57 = vrot.slane %v30, 2
    %v58 = vor.u32 %v56, %v57
    %v59 = vrot.slane %v35, 1
    %v60 = vrot.slane %v37, 2
    %v61 = vor.u32 %v59, %v60
    %vm64 = vcmask 1042432
    %vm65 = vsmask.f32 2304
    %vm66 = vmand %vm64, %vm65
    %v67 = vsel %vm66, %v58, 0
    %v68 = vsel %vm66, %v61, 0
    %71 = vrot.lane.b32.xlu0 %v46, 32
    %v72 = vpop.permute.xlu0 %71
    %73 = vrot.lane.b32.xlu0 %v47, 32
    %v74 = vpop.permute.xlu0 %73
    %77 = vrot.lane.b32.xlu0 %v53, 64
    %v78 = vpop.permute.xlu0 %77
    %79 = vrot.lane.b32.xlu0 %v55, 64
    %v80 = vpop.permute.xlu0 %79
    %83 = vrot.lane.b32.xlu0 %v67, 96
    %v84 = vpop.permute.xlu0 %83
    %85 = vrot.lane.b32.xlu0 %v68, 96
    %v86 = vpop.permute.xlu0 %85
    %vm87 = vcmask 261120
    %v90 = vsel %vm87, %v19, %v72
    %v93 = vsel %vm87, %v20, %v74
    %vm94 = vcmask 523264
    %v96 = vsel %vm94, %v90, %v78
    %v98 = vsel %vm94, %v93, %v80
    %vm99 = vcmask 785408
    %v101 = vsel %vm99, %v96, %v84
    %v103 = vsel %vm99, %v98, %v86
    %v104 = vld [vmem:[%s1] sm:$0xf]
    %v105 = vld [vmem:[%s1 + $0x4] sm:$0xf]
    %v106 = vld [vmem:[%s1 + $0x8] sm:$0xf]
    %v107 = vld [vmem:[%s1 + $0xc] sm:$0xf]
    %v108 = vld [vmem:[%s1 + $0x10] sm:$0xf]
    %v109 = vld [vmem:[%s1 + $0x14] sm:$0xf]
    %v110 = vld [vmem:[%s1 + $0x18] sm:$0xf]
    %v111 = vld [vmem:[%s1 + $0x1c] sm:$0xf]
    %v112 = vld [vmem:[%s1 + $0x20] sm:$0xf]
    %v113 = vld [vmem:[%s1 + $0x24] sm:$0xf]
    %v114 = vld [vmem:[%s1 + $0x28] sm:$0xf]
    %v115 = vld [vmem:[%s1 + $0x2c] sm:$0xf]
    %v116 = vld [vmem:[%s1 + $0x30] sm:$0xf]
    %v117 = vld [vmem:[%s1 + $0x34] sm:$0xf]
    %v118 = vld [vmem:[%s1 + $0x38] sm:$0xf]
    %v119 = vld [vmem:[%s1 + $0x3c] sm:$0xf]
    %v120 = vld [vmem:[%s2] sm:$0x1]
    %v122 = vlaneseq
    %v123 = vshrl.u32 %v122, 7
    %v124 = vsub.s32 0, %v123
    %v125 = vrot.slane %v120, %v124
    %v129 = vunpack.c.l.b16 %v101
    %v130 = vunpack.c.l.b16 %v103
    %v131 = vpack.c.b16 %v130, %v129
    %v149 = vunpack.c.l.b16 %v104
    %v150 = vunpack.c.l.b16 %v105
    %v151 = vunpack.c.l.b16 %v106
    %v152 = vunpack.c.l.b16 %v107
    %v153 = vunpack.c.l.b16 %v108
    %v154 = vunpack.c.l.b16 %v109
    %v155 = vunpack.c.l.b16 %v110
    %v156 = vunpack.c.l.b16 %v111
    %v157 = vunpack.c.l.b16 %v112
    %v158 = vunpack.c.l.b16 %v113
    %v159 = vunpack.c.l.b16 %v114
    %v160 = vunpack.c.l.b16 %v115
    %v161 = vunpack.c.l.b16 %v116
    %v162 = vunpack.c.l.b16 %v117
    %v163 = vunpack.c.l.b16 %v118
    %v164 = vunpack.c.l.b16 %v119
    %v165 = vpack.c.b16 %v150, %v149
    %v166 = vpack.c.b16 %v152, %v151
    %v167 = vpack.c.b16 %v154, %v153
    %v168 = vpack.c.b16 %v156, %v155
    %v169 = vpack.c.b16 %v158, %v157
    %v170 = vpack.c.b16 %v160, %v159
    %v171 = vpack.c.b16 %v162, %v161
    %v172 = vpack.c.b16 %v164, %v163
    %181 = vmatprep.subr.bf16.mxu0 0
    %182 = vmatpush1.bf16.msra.mxu0 %v165
    %183 = vmatprep.subr.bf16.mxu0 0
    %184 = vmatpush1.bf16.msra.mxu0 %v166
    %185 = vmatprep.subr.bf16.mxu0 0
    %186 = vmatpush1.bf16.msra.mxu0 %v167
    %187 = vmatprep.subr.bf16.mxu0 0
    %188 = vmatpush1.bf16.msra.mxu0 %v168
    %189 = vmatprep.subr.bf16.mxu0 0
    %190 = vmatpush1.bf16.msra.mxu0 %v169
    %191 = vmatprep.subr.bf16.mxu0 0
    %192 = vmatpush1.bf16.msra.mxu0 %v170
    %193 = vmatprep.subr.bf16.mxu0 0
    %194 = vmatpush1.bf16.msra.mxu0 %v171
    %195 = vmatprep.subr.bf16.mxu0 0
    %196 = vmatpush1.bf16.msra.mxu0 %v172
    %197 = vmatprep.subr.bf16.mxu0 0
    %198 = vmatpush1.bf16.msra.mxu0 0
    %199 = vmatprep.subr.bf16.mxu0 0
    %200 = vmatpush1.bf16.msra.mxu0 0
    %201 = vmatprep.subr.bf16.mxu0 0
    %202 = vmatpush1.bf16.msra.mxu0 0
    %203 = vmatprep.subr.bf16.mxu0 0
    %204 = vmatpush1.bf16.msra.mxu0 0
    %205 = vmatprep.subr.bf16.mxu0 0
    %206 = vmatpush1.bf16.msra.mxu0 0
    %207 = vmatprep.subr.bf16.mxu0 0
    %208 = vmatpush1.bf16.msra.mxu0 0
    %209 = vmatprep.subr.bf16.mxu0 0
    %210 = vmatpush1.bf16.msra.mxu0 0
    %211 = vmatprep.subr.bf16.mxu0 0
    %212 = vmatpush1.bf16.msra.mxu0 0
    %213 = vmatprep.mubr.bf16.mxu0 0
    %214 = vmatmul.mubr.bf16.gmra.mrb[0].mxu0 %v131
    %v215 = vpop.f32.mrb[0].mxu0
    %v216 = vadd.f32 %v125, %v215
    %v217 = vpop.f32.mrb[0].mxu0
    %v218 = vpop.f32.mrb[0].mxu0
    %v219 = vadd.f32 %v125, %v218
    %v220 = vpop.f32.mrb[0].mxu0
    %221 = vdwg.mxu0
    %v222 = vmax.f32 %v216, 0.0
    %v223 = vmax.f32 %v219, 0.0
    %v224 = vlaneseq
    %v225 = vshrl.u32 %v224, 7
    %v226 = vld [vmem:[%s3] sm:$0x3]
    %v228 = vunpack.c.l.s4 1966171168
    %v229 = vunpack.c.0.s8 %v228
    %v230 = vlaneseq
    %v231 = vshrl.u32 %v230, 7
    %v232 = vsub.s32 %v229, %v231
    %v233 = vrot.slane %v226, %v232
    %v234 = vcombine.high %v233, %v233
    %v236 = vunpack.c.l.s4 1966171168
    %v237 = vunpack.c.0.s8 %v236
    %v238 = vlaneseq
    %v239 = vshrl.u32 %v238, 7
    %v240 = vsub.s32 %v237, %v239
    %v241 = vrot.slane %v233, %v240
    %v243 = vunpack.c.l.s4 1966171168
    %v244 = vunpack.c.0.s8 %v243
    %v245 = vlaneseq
    %v246 = vshrl.u32 %v245, 7
    %v247 = vsub.s32 %v244, %v246
    %v248 = vrot.slane %v234, %v247
    %v249 = vlaneseq
    %v250 = vshrl.u32 %v249, 7
    %v251 = vsub.s32 0, %v250
    %v252 = vrot.slane %v241, %v251
    %v253 = vlaneseq
    %v254 = vshrl.u32 %v253, 7
    %v255 = vsub.s32 0, %v254
    %v256 = vrot.slane %v248, %v255
    %vm257 = vcmp.lt.s32.totalorder %v225, %v252
    %vm258 = vcmp.lt.s32.totalorder %v225, %v256
    %v259 = vsel %vm257, 1, 0
    %v260 = vsel %vm258, 1, 0
    %261 = vset.pattern.permute.xlu0 0
    %262 = vperm.xlu0 %261, %v259
    %v263 = vpop.permute.xlu0 %262
    %264 = vset.pattern.permute.xlu0 0
    %265 = vperm.xlu0 %264, %v260
    %v266 = vpop.permute.xlu0 %265
    %vm267 = vcmp.eq.s32.totalorder %v263, 1
    %vm268 = vcmp.eq.s32.totalorder %v266, 1
    %v269 = vsel %vm267, %v222, 0.0
    %v270 = vsel %vm268, %v223, 0.0
    %v271 = vrot.slane %v269, 4
    %v272 = vmax.f32 %v269, %v271
    %v273 = vrot.slane %v272, 2
    %v274 = vmax.f32 %v272, %v273
    %v275 = vrot.slane %v274, 1
    %v276 = vmax.f32 %v274, %v275
    %v277 = vrot.slane %v270, 4
    %v278 = vmax.f32 %v270, %v277
    %v279 = vrot.slane %v278, 2
    %v280 = vmax.f32 %v278, %v279
    %v281 = vrot.slane %v280, 1
    %v282 = vmax.f32 %v280, %v281
    %vm285 = vcmask 1041409
    %v286 = vsel %vm285, %v282, %v276
    %288 = vst [vmem:[#allocation2] sm:$0x3] %v286
    // Predicated region
    $region18: #{conv1d_forward.1} parent=1 // pred_check
      _
    $region19: #{conv1d_forward.1} parent=1 // pred_check_branch
      %290 = sbr.rel (0) target = $region21
    $region20: #{conv1d_forward.1} parent=1 // pred_region
      %s292 = ssub.s32 32, 32
      %293 = vsyncadd [#allocation3], %s292
      %s295 = sshll.u32 [#allocation2], 4
      %s296 = int_to_ptr.vmem [resolvable:$true] %s295
      %298 = dma.vmem_to_hbm [thread:$0]  %s296, 32, %s4, [#allocation3]
    $region21: #{conv1d_forward.1} parent=1 // pred_fallthru
      _
    // Predicated region
    $region22: #{conv1d_forward.1} parent=1 // pred_check
      _
    $region23: #{conv1d_forward.1} parent=1 // pred_check_branch
      %300 = sbr.rel (0) target = $region25
    $region24: #{conv1d_forward.1} parent=1 // pred_region
      %301 = dma.done [#allocation3], 32
    $region25: #{conv1d_forward.1} parent=1 // pred_fallthru
      _
    %302 = vsyncpa [#allocation3], 1

</llo_original>
